<compile_context>
chip_gen: v7x
topology: tpu7x:2x2x1
jax: 0.10.0
libtpu: 0.0.40
codegen_flags: <defaults>
</compile_context>

<pallas_src>
import jax
import jax.numpy as jnp
from jax.experimental import pallas as pl
from jax.experimental.pallas import tpu as pltpu


# ----------------------------------------------------------------------------
# Kernel variant A: spatial axis (HW) lane-dense.  Block x: (Bt, C, HW).
#   weights: w1t = fc1_w.T  (C, hidden),  w2 = fc2_w  (C, hidden)
# ----------------------------------------------------------------------------
def _se_kernel_hw_on_lanes(x_ref, w1t_ref, w2_ref, o_ref):
    x = x_ref[...].astype(jnp.float32)                           # (Bt, C, HW)
    inv_hw = jnp.float32(1.0 / x.shape[-1])

    # Global average pool: single lane-axis reduction -> (Bt, C, 1)
    p = jnp.sum(x, axis=-1, keepdims=True) * inv_hw

    # fc1 + Swish: h[b, j] = sum_c W1[j, c] * p[b, c]  -> (Bt, 1, hidden)
    w1t = w1t_ref[...].astype(jnp.float32)[None]                 # (1, C, hidden)
    h = jnp.sum(w1t * p, axis=1, keepdims=True)
    h = h * jax.nn.sigmoid(h)

    # fc2 + sigmoid: s[b, c] = sigmoid(sum_j W2[c, j] * h[b, j]) -> (Bt, C, 1)
    w2 = w2_ref[...].astype(jnp.float32)[None]                   # (1, C, hidden)
    s = jax.nn.sigmoid(jnp.sum(w2 * h, axis=-1, keepdims=True))

    # Channel-wise rescale; lane-dense output written exactly once.
    o_ref[...] = (x * s).astype(o_ref.dtype)


# ----------------------------------------------------------------------------
# Kernel variant B: channel axis (C) lane-dense.  Block x: (Bt, HW, C).
#   weights: w1 = fc1_w  (hidden, C),  w2t = fc2_w.T  (hidden, C)
# ----------------------------------------------------------------------------
def _se_kernel_c_on_lanes(x_ref, w1_ref, w2t_ref, o_ref):
    x = x_ref[...].astype(jnp.float32)                           # (Bt, HW, C)
    inv_hw = jnp.float32(1.0 / x.shape[-2])

    # Global average pool: sublane/XLU reduction -> (Bt, 1, C)
    p = jnp.sum(x, axis=-2, keepdims=True) * inv_hw

    # fc1 + Swish: h[b, j] = sum_c W1[j, c] * p[b, c]  -> (Bt, hidden, 1)
    w1 = w1_ref[...].astype(jnp.float32)[None]                   # (1, hidden, C)
    h = jnp.sum(w1 * p, axis=-1, keepdims=True)
    h = h * jax.nn.sigmoid(h)

    # fc2 + sigmoid: s[b, c] = sigmoid(sum_j W2[c, j] * h[b, j]) -> (Bt, 1, C)
    w2t = w2t_ref[...].astype(jnp.float32)[None]                 # (1, hidden, C)
    s = jax.nn.sigmoid(jnp.sum(w2t * h, axis=1, keepdims=True))

    # Lane-dense (C on lanes) output written exactly once.
    o_ref[...] = (x * s).astype(o_ref.dtype)


def _pick_batch_tile(B, row_bytes, target_bytes):
    """Largest Bt dividing B with Bt*row_bytes <= target, keeping >=2 grid steps."""
    best = 1
    for bt in range(1, B + 1):
        if B % bt:
            continue
        if bt * row_bytes > target_bytes:
            break
        if B == 1 or (B // bt) >= 2:      # keep >=2 steps so v7x's 2 TCs both get work
            best = bt
    return best


# ----------------------------------------------------------------------------
# Wrapper (NCHW in / NCHW out, same semantics as the PyTorch SEModule.forward)
# ----------------------------------------------------------------------------
def se_forward(x, fc1_w, fc2_w, *, target_block_bytes=2 << 20, alias_input=False):
    """x: (B, C, H, W);  fc1_w: (hidden, C);  fc2_w: (C, hidden).  bias-free SE."""
    B, C, H, W = x.shape
    hidden = fc1_w.shape[0]
    HW = H * W
    dtype = x.dtype
    itemsize = jnp.dtype(dtype).itemsize

    # Per-stage layout choice: whichever big axis is 128-lane friendly goes on lanes.
    hw_lane_ok = (HW % 128 == 0)
    c_lane_ok = (C % 128 == 0)
    use_c_lanes = (not hw_lane_ok) and (c_lane_ok or C >= HW)

    if use_c_lanes:
        # Channels-last layout (free for NHWC callers; a transpose for this NCHW API).
        x_in = jnp.transpose(x, (0, 2, 3, 1)).reshape(B, HW, C)
        wa, wb = fc1_w, fc2_w.T                                  # (hidden,C), (hidden,C)
        kernel = _se_kernel_c_on_lanes
        block = lambda bt: (bt, HW, C)
        w_shapes = ((hidden, C), (hidden, C))
    else:
        x_in = x.reshape(B, C, HW)                               # free view, no transpose
        wa, wb = fc1_w.T, fc2_w                                  # (C,hidden), (C,hidden)
        kernel = _se_kernel_hw_on_lanes
        block = lambda bt: (bt, C, HW)
        w_shapes = ((C, hidden), (C, hidden))

    # Batch-tile so each grid step moves a ~1-2 MiB block (HBM-roofline friendly),
    # while keeping >= 2 grid steps for megacore sharding.
    row_bytes = C * HW * itemsize
    Bt = _pick_batch_tile(B, row_bytes, target_block_bytes)
    grid = (B // Bt,)
    block_bytes = Bt * row_bytes
    w_bytes = sum(a * b for a, b in w_shapes) * jnp.dtype(fc1_w.dtype).itemsize
    # 2x double-buffered (in+out) blocks + f32 in-kernel copies/temps + weights + slack.
    vmem_limit = int(min(max(8 * block_bytes + 8 * w_bytes, 8 << 20), 32 << 20))

    # TODO(synk): weights could use pipeline_mode=pl.Buffered(1) (constant index_map
    # makes a second buffer pointless), but the saving is ~1 KiB so it is omitted.
    out = pl.pallas_call(
        kernel,
        out_shape=jax.ShapeDtypeStruct(x_in.shape, dtype),
        grid=grid,
        in_specs=[
            pl.BlockSpec(block(Bt), lambda b: (b, 0, 0)),
            pl.BlockSpec(w_shapes[0], lambda b: (0, 0)),
            pl.BlockSpec(w_shapes[1], lambda b: (0, 0)),
        ],
        out_specs=pl.BlockSpec(block(Bt), lambda b: (b, 0, 0)),
        compiler_params=pltpu.CompilerParams(
            dimension_semantics=("parallel",),
            vmem_limit_bytes=vmem_limit,
        ),
        # Optional in-place gate (removes one HBM allocation; off by default so the
        # caller's x stays valid without relying on XLA copy insertion).
        input_output_aliases=({0: 0} if alias_input else {}),
    )(x_in, wa, wb)

    if use_c_lanes:
        return jnp.transpose(out.reshape(B, H, W, C), (0, 3, 1, 2))
    return out.reshape(B, C, H, W)


# ----------------------------------------------------------------------------
# Pure-JAX reference (mirrors the PyTorch forward; fc1/fc2 are bias=False)
# ----------------------------------------------------------------------------
def reference_forward(x, fc1_w, fc2_w):
    hi = jax.lax.Precision.HIGHEST
    xf = x.astype(jnp.float32)
    p = jnp.mean(xf, axis=(2, 3))                                 # (B, C)
    h = jnp.dot(p, fc1_w.T, precision=hi)                         # (B, hidden)
    h = h * jax.nn.sigmoid(h)                                     # Swish (beta=1)
    s = jax.nn.sigmoid(jnp.dot(h, fc2_w.T, precision=hi))         # (B, C)
    return xf * s[:, :, None, None]


if __name__ == "__main__":
    key = jax.random.PRNGKey(0)

    # ---- Test 1: early-stage shape, HW multiple of 128 -> (B, C, HW) layout, f32 ----
    kx, k1, k2, key = jax.random.split(key, 4)
    B, C, H, W = 8, 32, 16, 16
    hidden = int(C * 0.25)
    x = jax.random.normal(kx, (B, C, H, W), jnp.float32)
    fc1_w = 0.3 * jax.random.normal(k1, (hidden, C), jnp.float32)   # nn.Linear(C, hidden, bias=False).weight
    fc2_w = 0.3 * jax.random.normal(k2, (C, hidden), jnp.float32)   # nn.Linear(hidden, C, bias=False).weight

    y = jax.block_until_ready(se_forward(x, fc1_w, fc2_w))
    y_ref = reference_forward(x, fc1_w, fc2_w)
    assert y.shape == (B, C, H, W), y.shape
    err = float(jnp.max(jnp.abs(y - y_ref)))
    assert jnp.allclose(y, y_ref, rtol=1e-4, atol=1e-4), f"f32 hw-lane err={err}"

    # ---- Test 2: late-stage shape, HW=49 not a 128-multiple -> (B, HW, C) layout ----
    kx2, k3, k4, key = jax.random.split(key, 4)
    B2, C2, H2, W2 = 2, 128, 7, 7
    hidden2 = int(C2 * 0.25)
    x2 = jax.random.normal(kx2, (B2, C2, H2, W2), jnp.float32)
    fc1_w2 = 0.2 * jax.random.normal(k3, (hidden2, C2), jnp.float32)
    fc2_w2 = 0.2 * jax.random.normal(k4, (C2, hidden2), jnp.float32)

    y2 = jax.block_until_ready(se_forward(x2, fc1_w2, fc2_w2))
    y2_ref = reference_forward(x2, fc1_w2, fc2_w2)
    assert y2.shape == (B2, C2, H2, W2), y2.shape
    err2 = float(jnp.max(jnp.abs(y2 - y2_ref)))
    assert jnp.allclose(y2, y2_ref, rtol=1e-4, atol=1e-4), f"f32 c-lane err={err2}"

    # ---- Test 3: bf16 activations (f32 math in-kernel, bf16 HBM traffic) ----
    xb = x.astype(jnp.bfloat16)
    yb = jax.block_until_ready(se_forward(xb, fc1_w, fc2_w))
    yb_ref = reference_forward(xb, fc1_w, fc2_w)       # f32 reference on bf16-rounded x
    errb = float(jnp.max(jnp.abs(yb.astype(jnp.float32) - yb_ref)))
    assert yb.dtype == jnp.bfloat16
    assert jnp.allclose(yb.astype(jnp.float32), yb_ref, rtol=5e-2, atol=5e-2), f"bf16 err={errb}"

    print("KERNEL_OK")
</pallas_src>

<mosaic_0001>
module attributes {stable_mosaic.version = 11 : i64} {
  func.func @_se_kernel_hw_on_lanes(%arg0: i32, %arg1: memref<4x32x256xf32, #tpu.memory_space<vmem>>, %arg2: memref<32x8xf32, #tpu.memory_space<vmem>>, %arg3: memref<32x8xf32, #tpu.memory_space<vmem>>, %arg4: memref<4x32x256xf32, #tpu.memory_space<vmem>>) attributes {dimension_semantics = [#tpu.dimension_semantics<parallel>], iteration_bounds = array<i64: 2>, scalar_prefetch = 0 : i64, scratch_operands = 0 : i64, tpu.core_type = #tpu.core_type<tc>, window_params = [{transform_indices = @transform_0, window_bounds = array<i64: 4, 32, 256>}, {pipeline_mode = #tpu.pipeline_mode<synchronous>, transform_indices = @transform_1, window_bounds = array<i64: 32, 8>}, {pipeline_mode = #tpu.pipeline_mode<synchronous>, transform_indices = @transform_2, window_bounds = array<i64: 32, 8>}, {transform_indices = @transform_3, window_bounds = array<i64: 4, 32, 256>}]} {
    %c0 = arith.constant 0 : index
    %c0_0 = arith.constant 0 : index
    %c0_1 = arith.constant 0 : index
    %0 = vector.load %arg1[%c0, %c0_0, %c0_1] : memref<4x32x256xf32, #tpu.memory_space<vmem>>, vector<4x32x256xf32>
    %cst = arith.constant dense<0.000000e+00> : vector<4x32xf32>
    %1 = vector.multi_reduction <add>, %0, %cst [2] : vector<4x32x256xf32> to vector<4x32xf32>
    %2 = vector.shape_cast %1 : vector<4x32xf32> to vector<4x32x1xf32>
    %cst_2 = arith.constant 3.906250e-03 : f32
    %3 = vector.broadcast %cst_2 : f32 to vector<4x32x1xf32>
    %4 = arith.mulf %2, %3 : vector<4x32x1xf32>
    %c0_3 = arith.constant 0 : index
    %c0_4 = arith.constant 0 : index
    %5 = vector.load %arg2[%c0_3, %c0_4] : memref<32x8xf32, #tpu.memory_space<vmem>>, vector<32x8xf32>
    %6 = vector.shape_cast %5 : vector<32x8xf32> to vector<1x32x8xf32>
    %7 = vector.broadcast %6 : vector<1x32x8xf32> to vector<4x32x8xf32>
    %8 = vector.broadcast %4 : vector<4x32x1xf32> to vector<4x32x8xf32>
    %9 = arith.mulf %7, %8 : vector<4x32x8xf32>
    %cst_5 = arith.constant dense<0.000000e+00> : vector<4x8xf32>
    %10 = vector.multi_reduction <add>, %9, %cst_5 [1] : vector<4x32x8xf32> to vector<4x8xf32>
    %11 = vector.shape_cast %10 : vector<4x8xf32> to vector<4x1x8xf32>
    %12 = arith.negf %11 : vector<4x1x8xf32>
    %13 = math.exp %12 : vector<4x1x8xf32>
    %cst_6 = arith.constant 1.000000e+00 : f32
    %14 = vector.broadcast %cst_6 : f32 to vector<4x1x8xf32>
    %15 = arith.addf %14, %13 : vector<4x1x8xf32>
    %16 = arith.divf %14, %15 : vector<4x1x8xf32>
    %17 = arith.mulf %11, %16 : vector<4x1x8xf32>
    %c0_7 = arith.constant 0 : index
    %c0_8 = arith.constant 0 : index
    %18 = vector.load %arg3[%c0_7, %c0_8] : memref<32x8xf32, #tpu.memory_space<vmem>>, vector<32x8xf32>
    %19 = vector.shape_cast %18 : vector<32x8xf32> to vector<1x32x8xf32>
    %20 = vector.broadcast %19 : vector<1x32x8xf32> to vector<4x32x8xf32>
    %21 = vector.broadcast %17 : vector<4x1x8xf32> to vector<4x32x8xf32>
    %22 = arith.mulf %20, %21 : vector<4x32x8xf32>
    %cst_9 = arith.constant dense<0.000000e+00> : vector<4x32xf32>
    %23 = vector.multi_reduction <add>, %22, %cst_9 [2] : vector<4x32x8xf32> to vector<4x32xf32>
    %24 = vector.shape_cast %23 : vector<4x32xf32> to vector<4x32x1xf32>
    %25 = arith.negf %24 : vector<4x32x1xf32>
    %26 = math.exp %25 : vector<4x32x1xf32>
    %cst_10 = arith.constant 1.000000e+00 : f32
    %27 = vector.broadcast %cst_10 : f32 to vector<4x32x1xf32>
    %28 = arith.addf %27, %26 : vector<4x32x1xf32>
    %29 = arith.divf %27, %28 : vector<4x32x1xf32>
    %30 = vector.broadcast %29 : vector<4x32x1xf32> to vector<4x32x256xf32>
    %31 = arith.mulf %0, %30 : vector<4x32x256xf32>
    %c0_11 = arith.constant 0 : index
    %c0_12 = arith.constant 0 : index
    %c0_13 = arith.constant 0 : index
    %32 = vector.load %arg4[%c0_11, %c0_12, %c0_13] : memref<4x32x256xf32, #tpu.memory_space<vmem>>, vector<4x32x256xf32>
    tpu.vector_store %arg4[%c0_11, %c0_12, %c0_13], %31 {strides = array<i32>} : memref<4x32x256xf32, #tpu.memory_space<vmem>>, vector<4x32x256xf32>,
    return
  }
  func.func @transform_0(%arg0: i32) -> (i32, i32, i32) {
    %c0_i32 = arith.constant 0 : i32
    %c0_i32_0 = arith.constant 0 : i32
    %c0_i32_1 = arith.constant 0 : i32
    return %arg0, %c0_i32, %c0_i32_0 : i32, i32, i32
  }
  func.func @transform_1(%arg0: i32) -> (i32, i32) {
    %c0_i32 = arith.constant 0 : i32
    %c0_i32_0 = arith.constant 0 : i32
    %c0_i32_1 = arith.constant 0 : i32
    return %c0_i32, %c0_i32_0 : i32, i32
  }
  func.func @transform_2(%arg0: i32) -> (i32, i32) {
    %c0_i32 = arith.constant 0 : i32
    %c0_i32_0 = arith.constant 0 : i32
    %c0_i32_1 = arith.constant 0 : i32
    return %c0_i32, %c0_i32_0 : i32, i32
  }
  func.func @transform_3(%arg0: i32) -> (i32, i32, i32) {
    %c0_i32 = arith.constant 0 : i32
    %c0_i32_0 = arith.constant 0 : i32
    %c0_i32_1 = arith.constant 0 : i32
    return %arg0, %c0_i32, %c0_i32_0 : i32, i32, i32
  }
}

</mosaic_0001>

<llo_original>
// kernel: tpu_custom_call.1
$region0: #{tpu_custom_call.1}
  #allocation0 [shape = 'u32[]', space=smem, size = 0x4, offset = 0x4, fixed_abs, tag = 'smem constant byte address 0x4 - core index']
  #allocation1 [shape = 'u32[144,128]{1,0:T(1,128)}', space=vmem, size = 0x12000, scoped, tag = 'internal scratch']
  %s0 = inlined_call_operand.hbm [shape: f32[8,32,256], index: 0, kind: input, shape index: {}]
  %s1 = inlined_call_operand.vmem [shape: f32[32,8], index: 1, kind: input, shape index: {}]
  %s2 = inlined_call_operand.vmem [shape: f32[32,8], index: 2, kind: input, shape index: {}]
  %s3 = inlined_call_operand.hbm [shape: f32[8,32,256], index: 3, kind: output, shape index: {}]
  %s4 = sld [smem:[#allocation0]]
  $region49: #{tpu_custom_call.1} parent=0
    _
  %s6 = ssub.s32 1, %s4
  %s7 = scalar_select 0, %s6, %s4
  $region1: #{tpu_custom_call.1} parent=0
    #allocation2 [shape = 'u8[262144]{0}', space=vmem, size = 0x40000, scoped, tag = 'input window, operand 0']
    #allocation3 [shape = 's32[2]{0}', space=sflag, size = 0x8, scoped, tag = 'scoped memory for tpu_custom_call.1']
    #allocation4 [shape = 's32[2]{0}', space=sflag, size = 0x8, scoped, tag = 'scoped memory for tpu_custom_call.1']
    #allocation5 [shape = 'u8[262144]{0}', space=vmem, size = 0x40000, scoped, tag = 'output window, operand 0']
    %8 = vsyncpa [#allocation3], 0
    %s9 = scalar_lea.sflag [#allocation3], 1
    %10 = vsyncpa %s9, 0
    %11 = vsyncpa [#allocation4], 0
    %s12 = scalar_lea.sflag [#allocation4], 1
    %13 = vsyncpa %s12, 0
    loop: start=0, step=1, limit=4
    $region2: #{tpu_custom_call.1} parent=1 // loop_pre_header
      _
    $region3: #{tpu_custom_call.1} parent=1 // loop_header
      %s15 = sphi 0, %s19
      %p16 = scmp.ge.s32.totalorder %s15, 4
      %s25 = sphi 0, %s27
      %s28 = sphi 0, %s25
      %s29 = sphi 0, %s28
      %s45 = sphi 0, %s29
      %s49 = sphi 0, %s49
      %s51 = sphi 0, %s49
      %s52 = sphi 0, %s51
      %s66 = sphi 0, %s52
      %s70 = sphi 0, %s70
      %s72 = sphi 0, %s70
      %s73 = sphi 0, %s72
      %s87 = sphi 0, %s73
      %s93 = sphi 0, %s95
      %s96 = sphi 0, %s93
      %s97 = sphi 0, %s96
      %s113 = sphi 0, %s97
    $region4: #{tpu_custom_call.1} parent=1 // loop_header_branch
      %18 = sbr.rel (%p16) target = $region8
    $region5: #{tpu_custom_call.1} parent=1 // loop_body
      %s20 = ssub.s32 %s15, 1
      %s21 = ssub.s32 %s15, 2
      %s22 = sadd.s32 %s15, 1
      %s23 = ssub.s32 %s15, %s22
      %p24 = scmp.eq.s32.totalorder %s23, 0
      %s26 = sadd.s32 %s25, 1
      %s27 = scalar_select %p24, %s25, %s26
      %p30 = pneg %p24
      %p31 = scmp.eq.s32.totalorder %s15, 1
      %p32 = por %p30, %p31
      %p33 = scmp.ne.s32.totalorder %s25, %s28
      %p34 = scmp.eq.s32.totalorder %s15, 0
      %p35 = por %p33, %p34
      %p36 = scmp.ne.s32.totalorder %s25, %s28
      %p37 = scmp.eq.s32.totalorder %s20, 1
      %p38 = por %p36, %p37
      %p39 = scmp.ne.s32.totalorder %s28, %s29
      %p40 = scmp.eq.s32.totalorder %s20, 0
      %p41 = por %p39, %p40
      %p42 = scmp.ne.s32.totalorder %s28, %s29
      %p43 = scmp.eq.s32.totalorder %s21, 1
      %p44 = por %p42, %p43
      %p46 = scmp.ne.s32.totalorder %s29, %s45
      %p47 = scmp.eq.s32.totalorder %s21, 0
      %p48 = por %p46, %p47
      %s50 = sadd.s32 %s49, 1
      %p53 = scmp.eq.s32.totalorder %s15, 1
      %p54 = scmp.ne.s32.totalorder %s49, %s51
      %p55 = scmp.eq.s32.totalorder %s15, 0
      %p56 = por %p54, %p55
      %p57 = scmp.ne.s32.totalorder %s49, %s51
      %p58 = scmp.eq.s32.totalorder %s20, 1
      %p59 = por %p57, %p58
      %p60 = scmp.ne.s32.totalorder %s51, %s52
      %p61 = scmp.eq.s32.totalorder %s20, 0
      %p62 = por %p60, %p61
      %p63 = scmp.ne.s32.totalorder %s51, %s52
      %p64 = scmp.eq.s32.totalorder %s21, 1
      %p65 = por %p63, %p64
      %p67 = scmp.ne.s32.totalorder %s52, %s66
      %p68 = scmp.eq.s32.totalorder %s21, 0
      %p69 = por %p67, %p68
      %s71 = sadd.s32 %s70, 1
      %p74 = scmp.eq.s32.totalorder %s15, 1
      %p75 = scmp.ne.s32.totalorder %s70, %s72
      %p76 = scmp.eq.s32.totalorder %s15, 0
      %p77 = por %p75, %p76
      %p78 = scmp.ne.s32.totalorder %s70, %s72
      %p79 = scmp.eq.s32.totalorder %s20, 1
      %p80 = por %p78, %p79
      %p81 = scmp.ne.s32.totalorder %s72, %s73
      %p82 = scmp.eq.s32.totalorder %s20, 0
      %p83 = por %p81, %p82
      %p84 = scmp.ne.s32.totalorder %s72, %s73
      %p85 = scmp.eq.s32.totalorder %s21, 1
      %p86 = por %p84, %p85
      %p88 = scmp.ne.s32.totalorder %s73, %s87
      %p89 = scmp.eq.s32.totalorder %s21, 0
      %p90 = por %p88, %p89
      %s91 = ssub.s32 %s15, %s22
      %p92 = scmp.eq.s32.totalorder %s91, 0
      %s94 = sadd.s32 %s93, 1
      %s95 = scalar_select %p92, %s93, %s94
      %p98 = pneg %p92
      %p99 = scmp.eq.s32.totalorder %s15, 1
      %p100 = por %p98, %p99
      %p101 = scmp.ne.s32.totalorder %s93, %s96
      %p102 = scmp.eq.s32.totalorder %s15, 0
      %p103 = por %p101, %p102
      %p104 = scmp.ne.s32.totalorder %s93, %s96
      %p105 = scmp.eq.s32.totalorder %s20, 1
      %p106 = por %p104, %p105
      %p107 = scmp.ne.s32.totalorder %s96, %s97
      %p108 = scmp.eq.s32.totalorder %s20, 0
      %p109 = por %p107, %p108
      %p110 = scmp.ne.s32.totalorder %s96, %s97
      %p111 = scmp.eq.s32.totalorder %s21, 1
      %p112 = por %p110, %p111
      %p114 = scmp.ne.s32.totalorder %s97, %s113
      %p115 = scmp.eq.s32.totalorder %s21, 0
      %p116 = por %p114, %p115
      %p117 = scmp.le.s32.totalorder 1, %s15
      %p118 = scmp.lt.s32.totalorder %s15, 3
      %p119 = pnand %p117, %p118
      %p120 = pneg %p119
      // Predicated region
      $region9: #{tpu_custom_call.1} parent=5 // pred_check
        _
      $region10: #{tpu_custom_call.1} parent=5 // pred_check_branch
        %122 = sbr.rel (%p119) target = $region12
      $region11: #{tpu_custom_call.1} parent=5 // pred_region
        %s123 = ssub.s32 %s15, 1
        // Predicated region
        $region13: #{tpu_custom_call.1} parent=11 // pred_check
          %p124 = pneg %p62
        $region14: #{tpu_custom_call.1} parent=11 // pred_check_branch
          %126 = sbr.rel (%p124) target = $region16
        $region15: #{tpu_custom_call.1} parent=11 // pred_region
          _
        $region16: #{tpu_custom_call.1} parent=11 // pred_fallthru
          _
        // Predicated region
        $region17: #{tpu_custom_call.1} parent=11 // pred_check
          %p127 = pneg %p83
        $region18: #{tpu_custom_call.1} parent=11 // pred_check_branch
          %129 = sbr.rel (%p127) target = $region20
        $region19: #{tpu_custom_call.1} parent=11 // pred_region
          _
        $region20: #{tpu_custom_call.1} parent=11 // pred_fallthru
          _
      $region12: #{tpu_custom_call.1} parent=5 // pred_fallthru
        _
      %p130 = scmp.lt.s32.totalorder %s15, 2
      // Predicated region
      $region21: #{tpu_custom_call.1} parent=5 // pred_check
        %p131 = pneg %p130
      $region22: #{tpu_custom_call.1} parent=5 // pred_check_branch
        %133 = sbr.rel (%p131) target = $region24
      $region23: #{tpu_custom_call.1} parent=5 // pred_region
        // Predicated region
        $region25: #{tpu_custom_call.1} parent=23 // pred_check
          %p134 = pneg %p35
        $region26: #{tpu_custom_call.1} parent=23 // pred_check_branch
          %136 = sbr.rel (%p134) target = $region28
        $region27: #{tpu_custom_call.1} parent=23 // pred_region
          %s137 = sand.u32 %s25, 1
          %s138 = scalar_lea.sflag [#allocation3], %s137
          %s139 = sand.u32 %s25, 1
          %s140 = smul.addr %s139, 256
          %s141 = scalar_lea.vmem [#allocation2], %s140
          %s142 = smul.u32 4, %s15
          %s144 = ssub.s32 4096, 4096
          %145 = vsyncadd %s138, %s144
          %s146 = smul.addr %s142, 8
          %s147 = smul.addr %s146, 128
          %s148 = scalar_lea.hbm %s0, %s147
          %s149 = sshll.u32 %s141, 4
          %s150 = int_to_ptr.vmem [resolvable:$true] %s149
          %155 = dma.hbm_to_vmem [thread:$0]  %s148, 4096, %s150, %s138, 256, 256, 16
        $region28: #{tpu_custom_call.1} parent=23 // pred_fallthru
          _
      $region24: #{tpu_custom_call.1} parent=5 // pred_fallthru
        _
      %p156 = scmp.le.s32.totalorder 1, %s15
      %p157 = scmp.lt.s32.totalorder %s15, 3
      %p158 = pnand %p156, %p157
      %p159 = pneg %p158
      // Predicated region
      $region29: #{tpu_custom_call.1} parent=5 // pred_check
        _
      $region30: #{tpu_custom_call.1} parent=5 // pred_check_branch
        %161 = sbr.rel (%p158) target = $region32
      $region31: #{tpu_custom_call.1} parent=5 // pred_region
        %s162 = ssub.s32 %s15, 1
        %s163 = sand.u32 %s28, 1
        %s164 = scalar_lea.sflag [#allocation3], %s163
        %s165 = sand.u32 %s28, 1
        %s166 = smul.addr %s165, 256
        %s167 = scalar_lea.vmem [#allocation2], %s166
        // Predicated region
        $region33: #{tpu_custom_call.1} parent=31 // pred_check
          %p168 = pneg %p41
        $region34: #{tpu_custom_call.1} parent=31 // pred_check_branch
          %170 = sbr.rel (%p168) target = $region36
        $region35: #{tpu_custom_call.1} parent=31 // pred_region
          %171 = dma.done %s164, 4096
        $region36: #{tpu_custom_call.1} parent=31 // pred_fallthru
          _
        %s172 = sand.u32 %s28, 1
        %s173 = scalar_lea.sflag [#allocation3], %s172
        %s174 = sand.u32 %s28, 1
        %s175 = smul.addr %s174, 256
        %s176 = scalar_lea.vmem [#allocation2], %s175
        %p177 = pneg %p41
        %p178 = pneg %p38
        %p179 = pneg %p62
        %p180 = pneg %p59
        %p181 = pneg %p83
        %p182 = pneg %p80
        %p183 = pneg %p109
        %p184 = pneg %p106
        %s185 = sand.u32 %s96, 1
        %s186 = scalar_lea.sflag [#allocation4], %s185
        %s187 = sand.u32 %s96, 1
        %s188 = smul.addr %s187, 256
        %s189 = scalar_lea.vmem [#allocation5], %s188
        %s190 = smul.u32 4, %s20
        %s191 = smul.u32 4, %s20
        %v192 = vld [vmem:[%s167] sm:$0xff]
        %v193 = vld [vmem:[%s167 + $0x8] sm:$0xff]
        %v194 = vld [vmem:[%s167 + $0x10] sm:$0xff]
        %v195 = vld [vmem:[%s167 + $0x18] sm:$0xff]
        %v196 = vld [vmem:[%s167 + $0x20] sm:$0xff]
        %v197 = vld [vmem:[%s167 + $0x28] sm:$0xff]
        %v198 = vld [vmem:[%s167 + $0x30] sm:$0xff]
        %v199 = vld [vmem:[%s167 + $0x38] sm:$0xff]
        %v200 = vld [vmem:[%s167 + $0x40] sm:$0xff]
        %v201 = vld [vmem:[%s167 + $0x48] sm:$0xff]
        %v202 = vld [vmem:[%s167 + $0x50] sm:$0xff]
        %v203 = vld [vmem:[%s167 + $0x58] sm:$0xff]
        %v204 = vld [vmem:[%s167 + $0x60] sm:$0xff]
        %v205 = vld [vmem:[%s167 + $0x68] sm:$0xff]
        %v206 = vld [vmem:[%s167 + $0x70] sm:$0xff]
        %v207 = vld [vmem:[%s167 + $0x78] sm:$0xff]
        %v208 = vld [vmem:[%s167 + $0x80] sm:$0xff]
        %v209 = vld [vmem:[%s167 + $0x88] sm:$0xff]
        %v210 = vld [vmem:[%s167 + $0x90] sm:$0xff]
        %v211 = vld [vmem:[%s167 + $0x98] sm:$0xff]
        %v212 = vld [vmem:[%s167 + $0xa0] sm:$0xff]
        %v213 = vld [vmem:[%s167 + $0xa8] sm:$0xff]
        %v214 = vld [vmem:[%s167 + $0xb0] sm:$0xff]
        %v215 = vld [vmem:[%s167 + $0xb8] sm:$0xff]
        %v216 = vld [vmem:[%s167 + $0xc0] sm:$0xff]
        %v217 = vld [vmem:[%s167 + $0xc8] sm:$0xff]
        %v218 = vld [vmem:[%s167 + $0xd0] sm:$0xff]
        %v219 = vld [vmem:[%s167 + $0xd8] sm:$0xff]
        %v220 = vld [vmem:[%s167 + $0xe0] sm:$0xff]
        %v221 = vld [vmem:[%s167 + $0xe8] sm:$0xff]
        %v222 = vld [vmem:[%s167 + $0xf0] sm:$0xff]
        %v223 = vld [vmem:[%s167 + $0xf8] sm:$0xff]
        %v224 = vadd.f32 %v192, %v193
        %225 = vadd.xlane.f32.xlu0 %v224
        %v226 = vpop.xlane.xlu0 %225
        %v227 = vadd.f32 %v194, %v195
        %228 = vadd.xlane.f32.xlu0 %v227
        %v229 = vpop.xlane.xlu0 %228
        %v230 = vadd.f32 %v196, %v197
        %231 = vadd.xlane.f32.xlu0 %v230
        %v232 = vpop.xlane.xlu0 %231
        %v233 = vadd.f32 %v198, %v199
        %234 = vadd.xlane.f32.xlu0 %v233
        %v235 = vpop.xlane.xlu0 %234
        %v236 = vadd.f32 %v200, %v201
        %237 = vadd.xlane.f32.xlu0 %v236
        %v238 = vpop.xlane.xlu0 %237
        %v239 = vadd.f32 %v202, %v203
        %240 = vadd.xlane.f32.xlu0 %v239
        %v241 = vpop.xlane.xlu0 %240
        %v242 = vadd.f32 %v204, %v205
        %243 = vadd.xlane.f32.xlu0 %v242
        %v244 = vpop.xlane.xlu0 %243
        %v245 = vadd.f32 %v206, %v207
        %246 = vadd.xlane.f32.xlu0 %v245
        %v247 = vpop.xlane.xlu0 %246
        %v248 = vadd.f32 %v208, %v209
        %249 = vadd.xlane.f32.xlu0 %v248
        %v250 = vpop.xlane.xlu0 %249
        %v251 = vadd.f32 %v210, %v211
        %252 = vadd.xlane.f32.xlu0 %v251
        %v253 = vpop.xlane.xlu0 %252
        %v254 = vadd.f32 %v212, %v213
        %255 = vadd.xlane.f32.xlu0 %v254
        %v256 = vpop.xlane.xlu0 %255
        %v257 = vadd.f32 %v214, %v215
        %258 = vadd.xlane.f32.xlu0 %v257
        %v259 = vpop.xlane.xlu0 %258
        %v260 = vadd.f32 %v216, %v217
        %261 = vadd.xlane.f32.xlu0 %v260
        %v262 = vpop.xlane.xlu0 %261
        %v263 = vadd.f32 %v218, %v219
        %264 = vadd.xlane.f32.xlu0 %v263
        %v265 = vpop.xlane.xlu0 %264
        %v266 = vadd.f32 %v220, %v221
        %267 = vadd.xlane.f32.xlu0 %v266
        %v268 = vpop.xlane.xlu0 %267
        %v269 = vadd.f32 %v222, %v223
        %270 = vadd.xlane.f32.xlu0 %v269
        %v271 = vpop.xlane.xlu0 %270
        %v272 = vmul.f32 %v226, 0.00390625
        %v273 = vmul.f32 %v229, 0.00390625
        %v274 = vmul.f32 %v232, 0.00390625
        %v275 = vmul.f32 %v235, 0.00390625
        %v276 = vmul.f32 %v238, 0.00390625
        %v277 = vmul.f32 %v241, 0.00390625
        %v278 = vmul.f32 %v244, 0.00390625
        %v279 = vmul.f32 %v247, 0.00390625
        %v280 = vmul.f32 %v250, 0.00390625
        %v281 = vmul.f32 %v253, 0.00390625
        %v282 = vmul.f32 %v256, 0.00390625
        %v283 = vmul.f32 %v259, 0.00390625
        %v284 = vmul.f32 %v262, 0.00390625
        %v285 = vmul.f32 %v265, 0.00390625
        %v286 = vmul.f32 %v268, 0.00390625
        %v287 = vmul.f32 %v271, 0.00390625
        %v288 = vld [vmem:[%s1] sm:$0xff]
        %v289 = vld [vmem:[%s1 + $0x8] sm:$0xff]
        %v290 = vld [vmem:[%s1 + $0x10] sm:$0xff]
        %v291 = vld [vmem:[%s1 + $0x18] sm:$0xff]
        %v292 = vmul.f32 %v288, %v272
        %v293 = vmul.f32 %v289, %v273
        %v294 = vmul.f32 %v290, %v274
        %v295 = vmul.f32 %v291, %v275
        %v296 = vmul.f32 %v288, %v276
        %v297 = vmul.f32 %v289, %v277
        %v298 = vmul.f32 %v290, %v278
        %v299 = vmul.f32 %v291, %v279
        %v300 = vmul.f32 %v288, %v280
        %v301 = vmul.f32 %v289, %v281
        %v302 = vmul.f32 %v290, %v282
        %v303 = vmul.f32 %v291, %v283
        %v304 = vmul.f32 %v288, %v284
        %v305 = vmul.f32 %v289, %v285
        %v306 = vmul.f32 %v290, %v286
        %v307 = vmul.f32 %v291, %v287
        %vm308 = vcmask 64512
        %v309 = vsel %vm308, %v292, 0.0
        %v310 = vsel %vm308, %v293, 0.0
        %v311 = vadd.f32 %v309, %v310
        %v312 = vsel %vm308, %v294, 0.0
        %v313 = vadd.f32 %v311, %v312
        %v314 = vsel %vm308, %v295, 0.0
        %v315 = vadd.f32 %v313, %v314
        %v316 = vrot.slane %v315, 4
        %v317 = vadd.f32 %v315, %v316
        %v318 = vrot.slane %v317, 2
        %v319 = vadd.f32 %v317, %v318
        %v320 = vrot.slane %v319, 1
        %v321 = vadd.f32 %v319, %v320
        %v322 = vsel %vm308, %v296, 0.0
        %v323 = vsel %vm308, %v297, 0.0
        %v324 = vadd.f32 %v322, %v323
        %v325 = vsel %vm308, %v298, 0.0
        %v326 = vadd.f32 %v324, %v325
        %v327 = vsel %vm308, %v299, 0.0
        %v328 = vadd.f32 %v326, %v327
        %v329 = vrot.slane %v328, 4
        %v330 = vadd.f32 %v328, %v329
        %v331 = vrot.slane %v330, 2
        %v332 = vadd.f32 %v330, %v331
        %v333 = vrot.slane %v332, 1
        %v334 = vadd.f32 %v332, %v333
        %v335 = vsel %vm308, %v300, 0.0
        %v336 = vsel %vm308, %v301, 0.0
        %v337 = vadd.f32 %v335, %v336
        %v338 = vsel %vm308, %v302, 0.0
        %v339 = vadd.f32 %v337, %v338
        %v340 = vsel %vm308, %v303, 0.0
        %v341 = vadd.f32 %v339, %v340
        %v342 = vrot.slane %v341, 4
        %v343 = vadd.f32 %v341, %v342
        %v344 = vrot.slane %v343, 2
        %v345 = vadd.f32 %v343, %v344
        %v346 = vrot.slane %v345, 1
        %v347 = vadd.f32 %v345, %v346
        %v348 = vsel %vm308, %v304, 0.0
        %v349 = vsel %vm308, %v305, 0.0
        %v350 = vadd.f32 %v348, %v349
        %v351 = vsel %vm308, %v306, 0.0
        %v352 = vadd.f32 %v350, %v351
        %v353 = vsel %vm308, %v307, 0.0
        %v354 = vadd.f32 %v352, %v353
        %v355 = vrot.slane %v354, 4
        %v356 = vadd.f32 %v354, %v355
        %v357 = vrot.slane %v356, 2
        %v358 = vadd.f32 %v356, %v357
        %v359 = vrot.slane %v358, 1
        %v360 = vadd.f32 %v358, %v359
        %v361 = vxor.u32 %v321, 2147483648
        %v362 = vxor.u32 %v334, 2147483648
        %v363 = vxor.u32 %v347, 2147483648
        %v364 = vxor.u32 %v360, 2147483648
        %v365 = vmul.f32 %v361, 1.442695
        %v366 = vpow.pop %v365
        %v367 = vmul.f32 %v362, 1.442695
        %v368 = vpow.pop %v367
        %v369 = vmul.f32 %v363, 1.442695
        %v370 = vpow.pop %v369
        %v371 = vmul.f32 %v364, 1.442695
        %v372 = vpow.pop %v371
        %v373 = vadd.f32 %v366, 1.0
        %v374 = vadd.f32 %v368, 1.0
        %v375 = vadd.f32 %v370, 1.0
        %v376 = vadd.f32 %v372, 1.0
        %v377 = vrcp.pop %v373
        %v378 = vmul.f32 1.0, %v377
        %v379 = vrcp.pop %v374
        %v380 = vmul.f32 1.0, %v379
        %v381 = vrcp.pop %v375
        %v382 = vmul.f32 1.0, %v381
        %v383 = vrcp.pop %v376
        %v384 = vmul.f32 1.0, %v383
        %v385 = vmul.f32 %v321, %v378
        %v386 = vmul.f32 %v334, %v380
        %v387 = vmul.f32 %v347, %v382
        %v388 = vmul.f32 %v360, %v384
        %v389 = vld [vmem:[%s2] sm:$0xff]
        %v390 = vld [vmem:[%s2 + $0x8] sm:$0xff]
        %v391 = vld [vmem:[%s2 + $0x10] sm:$0xff]
        %v392 = vld [vmem:[%s2 + $0x18] sm:$0xff]
        %v393 = vmul.f32 %v389, %v385
        %v394 = vmul.f32 %v390, %v385
        %v395 = vmul.f32 %v391, %v385
        %v396 = vmul.f32 %v392, %v385
        %v397 = vmul.f32 %v389, %v386
        %v398 = vmul.f32 %v390, %v386
        %v399 = vmul.f32 %v391, %v386
        %v400 = vmul.f32 %v392, %v386
        %v401 = vmul.f32 %v389, %v387
        %v402 = vmul.f32 %v390, %v387
        %v403 = vmul.f32 %v391, %v387
        %v404 = vmul.f32 %v392, %v387
        %v405 = vmul.f32 %v389, %v388
        %v406 = vmul.f32 %v390, %v388
        %v407 = vmul.f32 %v391, %v388
        %v408 = vmul.f32 %v392, %v388
        %v409 = vsel %vm308, %v393, 0.0
        %410 = vadd.xlane.f32.xlu0 %v409
        %v411 = vpop.xlane.xlu0 %410
        %v412 = vsel %vm308, %v394, 0.0
        %413 = vadd.xlane.f32.xlu0 %v412
        %v414 = vpop.xlane.xlu0 %413
        %v415 = vsel %vm308, %v395, 0.0
        %416 = vadd.xlane.f32.xlu0 %v415
        %v417 = vpop.xlane.xlu0 %416
        %v418 = vsel %vm308, %v396, 0.0
        %419 = vadd.xlane.f32.xlu0 %v418
        %v420 = vpop.xlane.xlu0 %419
        %v421 = vsel %vm308, %v397, 0.0
        %422 = vadd.xlane.f32.xlu0 %v421
        %v423 = vpop.xlane.xlu0 %422
        %v424 = vsel %vm308, %v398, 0.0
        %425 = vadd.xlane.f32.xlu0 %v424
        %v426 = vpop.xlane.xlu0 %425
        %v427 = vsel %vm308, %v399, 0.0
        %428 = vadd.xlane.f32.xlu0 %v427
        %v429 = vpop.xlane.xlu0 %428
        %v430 = vsel %vm308, %v400, 0.0
        %431 = vadd.xlane.f32.xlu0 %v430
        %v432 = vpop.xlane.xlu0 %431
        %v433 = vsel %vm308, %v401, 0.0
        %434 = vadd.xlane.f32.xlu0 %v433
        %v435 = vpop.xlane.xlu0 %434
        %v436 = vsel %vm308, %v402, 0.0
        %437 = vadd.xlane.f32.xlu0 %v436
        %v438 = vpop.xlane.xlu0 %437
        %v439 = vsel %vm308, %v403, 0.0
        %440 = vadd.xlane.f32.xlu0 %v439
        %v441 = vpop.xlane.xlu0 %440
        %v442 = vsel %vm308, %v404, 0.0
        %443 = vadd.xlane.f32.xlu0 %v442
        %v444 = vpop.xlane.xlu0 %443
        %v445 = vsel %vm308, %v405, 0.0
        %446 = vadd.xlane.f32.xlu0 %v445
        %v447 = vpop.xlane.xlu0 %446
        %v448 = vsel %vm308, %v406, 0.0
        %449 = vadd.xlane.f32.xlu0 %v448
        %v450 = vpop.xlane.xlu0 %449
        %v451 = vsel %vm308, %v407, 0.0
        %452 = vadd.xlane.f32.xlu0 %v451
        %v453 = vpop.xlane.xlu0 %452
        %v454 = vsel %vm308, %v408, 0.0
        %455 = vadd.xlane.f32.xlu0 %v454
        %v456 = vpop.xlane.xlu0 %455
        %v457 = vxor.u32 %v411, 2147483648
        %v458 = vxor.u32 %v414, 2147483648
        %v459 = vxor.u32 %v417, 2147483648
        %v460 = vxor.u32 %v420, 2147483648
        %v461 = vxor.u32 %v423, 2147483648
        %v462 = vxor.u32 %v426, 2147483648
        %v463 = vxor.u32 %v429, 2147483648
        %v464 = vxor.u32 %v432, 2147483648
        %v465 = vxor.u32 %v435, 2147483648
        %v466 = vxor.u32 %v438, 2147483648
        %v467 = vxor.u32 %v441, 2147483648
        %v468 = vxor.u32 %v444, 2147483648
        %v469 = vxor.u32 %v447, 2147483648
        %v470 = vxor.u32 %v450, 2147483648
        %v471 = vxor.u32 %v453, 2147483648
        %v472 = vxor.u32 %v456, 2147483648
        %v473 = vmul.f32 %v457, 1.442695
        %v474 = vpow.pop %v473
        %v475 = vmul.f32 %v458, 1.442695
        %v476 = vpow.pop %v475
        %v477 = vmul.f32 %v459, 1.442695
        %v478 = vpow.pop %v477
        %v479 = vmul.f32 %v460, 1.442695
        %v480 = vpow.pop %v479
        %v481 = vmul.f32 %v461, 1.442695
        %v482 = vpow.pop %v481
        %v483 = vmul.f32 %v462, 1.442695
        %v484 = vpow.pop %v483
        %v485 = vmul.f32 %v463, 1.442695
        %v486 = vpow.pop %v485
        %v487 = vmul.f32 %v464, 1.442695
        %v488 = vpow.pop %v487
        %v489 = vmul.f32 %v465, 1.442695
        %v490 = vpow.pop %v489
        %v491 = vmul.f32 %v466, 1.442695
        %v492 = vpow.pop %v491
        %v493 = vmul.f32 %v467, 1.442695
        %v494 = vpow.pop %v493
        %v495 = vmul.f32 %v468, 1.442695
        %v496 = vpow.pop %v495
        %v497 = vmul.f32 %v469, 1.442695
        %v498 = vpow.pop %v497
        %v499 = vmul.f32 %v470, 1.442695
        %v500 = vpow.pop %v499
        %v501 = vmul.f32 %v471, 1.442695
        %v502 = vpow.pop %v501
        %v503 = vmul.f32 %v472, 1.442695
        %v504 = vpow.pop %v503
        %v505 = vadd.f32 %v474, 1.0
        %v506 = vadd.f32 %v476, 1.0
        %v507 = vadd.f32 %v478, 1.0
        %v508 = vadd.f32 %v480, 1.0
        %v509 = vadd.f32 %v482, 1.0
        %v510 = vadd.f32 %v484, 1.0
        %v511 = vadd.f32 %v486, 1.0
        %v512 = vadd.f32 %v488, 1.0
        %v513 = vadd.f32 %v490, 1.0
        %v514 = vadd.f32 %v492, 1.0
        %v515 = vadd.f32 %v494, 1.0
        %v516 = vadd.f32 %v496, 1.0
        %v517 = vadd.f32 %v498, 1.0
        %v518 = vadd.f32 %v500, 1.0
        %v519 = vadd.f32 %v502, 1.0
        %v520 = vadd.f32 %v504, 1.0
        %v521 = vrcp.pop %v505
        %v522 = vmul.f32 1.0, %v521
        %v523 = vrcp.pop %v506
        %v524 = vmul.f32 1.0, %v523
        %v525 = vrcp.pop %v507
        %v526 = vmul.f32 1.0, %v525
        %v527 = vrcp.pop %v508
        %v528 = vmul.f32 1.0, %v527
        %v529 = vrcp.pop %v509
        %v530 = vmul.f32 1.0, %v529
        %v531 = vrcp.pop %v510
        %v532 = vmul.f32 1.0, %v531
        %v533 = vrcp.pop %v511
        %v534 = vmul.f32 1.0, %v533
        %v535 = vrcp.pop %v512
        %v536 = vmul.f32 1.0, %v535
        %v537 = vrcp.pop %v513
        %v538 = vmul.f32 1.0, %v537
        %v539 = vrcp.pop %v514
        %v540 = vmul.f32 1.0, %v539
        %v541 = vrcp.pop %v515
        %v542 = vmul.f32 1.0, %v541
        %v543 = vrcp.pop %v516
        %v544 = vmul.f32 1.0, %v543
        %v545 = vrcp.pop %v517
        %v546 = vmul.f32 1.0, %v545
        %v547 = vrcp.pop %v518
        %v548 = vmul.f32 1.0, %v547
        %v549 = vrcp.pop %v519
        %v550 = vmul.f32 1.0, %v549
        %v551 = vrcp.pop %v520
        %v552 = vmul.f32 1.0, %v551
        %v553 = vmul.f32 %v192, %v522
        %v554 = vmul.f32 %v193, %v522
        %v555 = vmul.f32 %v194, %v524
        %v556 = vmul.f32 %v195, %v524
        %v557 = vmul.f32 %v196, %v526
        %v558 = vmul.f32 %v197, %v526
        %v559 = vmul.f32 %v198, %v528
        %v560 = vmul.f32 %v199, %v528
        %v561 = vmul.f32 %v200, %v530
        %v562 = vmul.f32 %v201, %v530
        %v563 = vmul.f32 %v202, %v532
        %v564 = vmul.f32 %v203, %v532
        %v565 = vmul.f32 %v204, %v534
        %v566 = vmul.f32 %v205, %v534
        %v567 = vmul.f32 %v206, %v536
        %v568 = vmul.f32 %v207, %v536
        %v569 = vmul.f32 %v208, %v538
        %v570 = vmul.f32 %v209, %v538
        %v571 = vmul.f32 %v210, %v540
        %v572 = vmul.f32 %v211, %v540
        %v573 = vmul.f32 %v212, %v542
        %v574 = vmul.f32 %v213, %v542
        %v575 = vmul.f32 %v214, %v544
        %v576 = vmul.f32 %v215, %v544
        %v577 = vmul.f32 %v216, %v546
        %v578 = vmul.f32 %v217, %v546
        %v579 = vmul.f32 %v218, %v548
        %v580 = vmul.f32 %v219, %v548
        %v581 = vmul.f32 %v220, %v550
        %v582 = vmul.f32 %v221, %v550
        %v583 = vmul.f32 %v222, %v552
        %v584 = vmul.f32 %v223, %v552
        %585 = vst [vmem:[%s189] sm:$0xff] %v553
        %586 = vst [vmem:[%s189 + $0x8] sm:$0xff] %v554
        %587 = vst [vmem:[%s189 + $0x10] sm:$0xff] %v555
        %588 = vst [vmem:[%s189 + $0x18] sm:$0xff] %v556
        %589 = vst [vmem:[%s189 + $0x20] sm:$0xff] %v557
        %590 = vst [vmem:[%s189 + $0x28] sm:$0xff] %v558
        %591 = vst [vmem:[%s189 + $0x30] sm:$0xff] %v559
        %592 = vst [vmem:[%s189 + $0x38] sm:$0xff] %v560
        %593 = vst [vmem:[%s189 + $0x40] sm:$0xff] %v561
        %594 = vst [vmem:[%s189 + $0x48] sm:$0xff] %v562
        %595 = vst [vmem:[%s189 + $0x50] sm:$0xff] %v563
        %596 = vst [vmem:[%s189 + $0x58] sm:$0xff] %v564
        %597 = vst [vmem:[%s189 + $0x60] sm:$0xff] %v565
        %598 = vst [vmem:[%s189 + $0x68] sm:$0xff] %v566
        %599 = vst [vmem:[%s189 + $0x70] sm:$0xff] %v567
        %600 = vst [vmem:[%s189 + $0x78] sm:$0xff] %v568
        %601 = vst [vmem:[%s189 + $0x80] sm:$0xff] %v569
        %602 = vst [vmem:[%s189 + $0x88] sm:$0xff] %v570
        %603 = vst [vmem:[%s189 + $0x90] sm:$0xff] %v571
        %604 = vst [vmem:[%s189 + $0x98] sm:$0xff] %v572
        %605 = vst [vmem:[%s189 + $0xa0] sm:$0xff] %v573
        %606 = vst [vmem:[%s189 + $0xa8] sm:$0xff] %v574
        %607 = vst [vmem:[%s189 + $0xb0] sm:$0xff] %v575
        %608 = vst [vmem:[%s189 + $0xb8] sm:$0xff] %v576
        %609 = vst [vmem:[%s189 + $0xc0] sm:$0xff] %v577
        %610 = vst [vmem:[%s189 + $0xc8] sm:$0xff] %v578
        %611 = vst [vmem:[%s189 + $0xd0] sm:$0xff] %v579
        %612 = vst [vmem:[%s189 + $0xd8] sm:$0xff] %v580
        %613 = vst [vmem:[%s189 + $0xe0] sm:$0xff] %v581
        %614 = vst [vmem:[%s189 + $0xe8] sm:$0xff] %v582
        %615 = vst [vmem:[%s189 + $0xf0] sm:$0xff] %v583
        %616 = vst [vmem:[%s189 + $0xf8] sm:$0xff] %v584
        %s617 = sand.u32 %s96, 1
        %s618 = scalar_lea.sflag [#allocation4], %s617
        %s619 = sand.u32 %s96, 1
        %s620 = smul.addr %s619, 256
        %s621 = scalar_lea.vmem [#allocation5], %s620
        // Predicated region
        $region37: #{tpu_custom_call.1} parent=31 // pred_check
          %p622 = pneg %p106
        $region38: #{tpu_custom_call.1} parent=31 // pred_check_branch
          %624 = sbr.rel (%p622) target = $region40
        $region39: #{tpu_custom_call.1} parent=31 // pred_region
          %s625 = smul.u32 4, %s20
          %s627 = ssub.s32 4096, 4096
          %628 = vsyncadd %s618, %s627
          %s629 = smul.addr %s625, 8
          %s630 = smul.addr %s629, 128
          %s631 = scalar_lea.hbm %s3, %s630
          %s632 = sshll.u32 %s621, 4
          %s633 = int_to_ptr.vmem [resolvable:$true] %s632
          %638 = dma.vmem_to_hbm [thread:$0]  %s633, 4096, %s631, %s618, 256, 256, 16
        $region40: #{tpu_custom_call.1} parent=31 // pred_fallthru
          _
      $region32: #{tpu_custom_call.1} parent=5 // pred_fallthru
        _
      %p639 = scmp.le.s32.totalorder 2, %s15
      // Predicated region
      $region41: #{tpu_custom_call.1} parent=5 // pred_check
        %p640 = pneg %p639
      $region42: #{tpu_custom_call.1} parent=5 // pred_check_branch
        %642 = sbr.rel (%p640) target = $region44
      $region43: #{tpu_custom_call.1} parent=5 // pred_region
        %s643 = ssub.s32 %s15, 2
        // Predicated region
        $region45: #{tpu_custom_call.1} parent=43 // pred_check
          %p644 = pneg %p112
        $region46: #{tpu_custom_call.1} parent=43 // pred_check_branch
          %646 = sbr.rel (%p644) target = $region48
        $region47: #{tpu_custom_call.1} parent=43 // pred_region
          %s647 = sand.u32 %s97, 1
          %s648 = scalar_lea.sflag [#allocation4], %s647
          %s649 = sand.u32 %s97, 1
          %s650 = smul.addr %s649, 256
          %s651 = scalar_lea.vmem [#allocation5], %s650
          %652 = dma.done %s648, 4096
        $region48: #{tpu_custom_call.1} parent=43 // pred_fallthru
          _
      $region44: #{tpu_custom_call.1} parent=5 // pred_fallthru
        _
    $region6: #{tpu_custom_call.1} parent=1 // loop_footer
      %s19 = sadd.s32 1, %s15
    $region7: #{tpu_custom_call.1} parent=1 // loop_footer_branch
      %14 = sbr.rel target = $region3
    $region8: #{tpu_custom_call.1} parent=1 // loop_exit
      _
    %653 = vsyncpa [#allocation3], 1
    %s654 = scalar_lea.sflag [#allocation3], 1
    %655 = vsyncpa %s654, 1
    %656 = vsyncpa [#allocation4], 1
    %s657 = scalar_lea.sflag [#allocation4], 1
    %658 = vsyncpa %s657, 1

</llo_original>
